<compile_context>
chip_gen: v5e
topology: v5e:2x2
jax: 0.10.0
libtpu: 0.0.40
codegen_flags: <defaults>
</compile_context>

<pallas_src>
import jax
import jax.numpy as jnp
from jax.experimental import pallas as pl
from jax.experimental.pallas import tpu as pltpu


def _round_up(a: int, m: int) -> int:
    return ((a + m - 1) // m) * m


_NEG_INF = -1e30                 # finite "minus infinity" for padded class lanes
_VMEM_LIMIT_BYTES = 48 << 20     # scoped-VMEM request (< v7x 64 MiB physical)
_VMEM_TILE_BUDGET = 40 << 20     # bytes the pipelined blocks may consume
_MAX_TILE_B = 2048               # diminishing returns past ~1024 rows (measured)


# ----------------------------- Pallas kernel -------------------------------

def _categorical_logits_kernel(x_ref, w_ref, b_ref, logits_ref):
    # x_ref:      [TILE_B, D_in]       pipelined over the batch grid
    # w_ref:      [D_in,  D_out_pad]   resident across grid steps (single buffer)
    # b_ref:      [1,     D_out_pad]   resident; padded lanes hold -1e30
    # logits_ref: [TILE_B, D_out_pad]  normalized logits (log-probs)
    x = x_ref[...].astype(w_ref.dtype)       # bf16 MXU path when the weight is bf16
    z = jnp.dot(x, w_ref[...], preferred_element_type=jnp.float32) + b_ref[...]
    # Numerically stable log-softmax (the normalization torch's Categorical applies);
    # padded lanes (-1e30 bias) underflow to exactly 0 in the sum.
    m = jnp.max(z, axis=-1, keepdims=True)
    e = jnp.exp(z - m)
    s = jnp.sum(e, axis=-1, keepdims=True)
    logits_ref[...] = z - (m + jnp.log(s))


# ------------------------------ call wrapper --------------------------------

def _resident_spec(shape):
    """Constant-index input: single-buffer it if the API allows (halves weight
    VMEM residency -- matters most for large heads on v7x's 64 MiB VMEM)."""
    buffered = getattr(pl, "Buffered", None)
    if buffered is not None:
        try:
            return pl.BlockSpec(shape, lambda i: (0, 0), pipeline_mode=buffered(1))
        except TypeError:
            pass
    return pl.BlockSpec(shape, lambda i: (0, 0))


def _pick_tile_b(batch, d_in, d_out_pad, x_itemsize, w_itemsize):
    d_in_lane = _round_up(d_in, 128)        # x tile is lane-padded to 128 in VMEM
    d_in_sub = _round_up(d_in, 8)           # weight sublane padding
    resident = d_in_sub * d_out_pad * w_itemsize + 8 * d_out_pad * 4   # W (1 buf) + bias
    per_row = 2 * (d_in_lane * x_itemsize + d_out_pad * 4)             # 2x x-buf + 2x out-buf
    tile_b = max(8, ((_VMEM_TILE_BUDGET - resident) // per_row) // 8 * 8)
    # TODO(synk): for vocab-scale heads where resident W^T alone blows the VMEM budget,
    # add a class-dimension grid axis ("arbitrary", last) with an online-softmax.
    tile_b = min(tile_b, _MAX_TILE_B, _round_up(batch, 8))
    # Keep the "parallel" batch axis >= 2 grid steps on moderate batches so both v7x
    # TensorCores get work (but don't shrink tiles below 256 rows just for that).
    half = _round_up(-(-batch // 2), 8)
    if half >= 256:
        tile_b = min(tile_b, half)
    return tile_b


@jax.jit
def categorical_forward(x, w_t_pad, b_pad):
    """x: [B, D_in]; w_t_pad: [D_in, D_out_pad]; b_pad: [1, D_out_pad] (f32).

    Returns lane-padded, normalized logits (log-probs) of shape [B, D_out_pad]."""
    B, D_in = x.shape
    _, D_out_pad = w_t_pad.shape

    tile_b = _pick_tile_b(B, D_in, D_out_pad,
                          jnp.dtype(x.dtype).itemsize,
                          jnp.dtype(w_t_pad.dtype).itemsize)
    grid = (pl.cdiv(B, tile_b),)

    cost = pl.CostEstimate(
        flops=2 * B * D_in * D_out_pad,
        transcendentals=B * D_out_pad,            # exp (+ log amortized)
        bytes_accessed=(B * D_in * jnp.dtype(x.dtype).itemsize
                        + D_in * D_out_pad * jnp.dtype(w_t_pad.dtype).itemsize
                        + D_out_pad * 4
                        + B * D_out_pad * 4),
    )

    return pl.pallas_call(
        _categorical_logits_kernel,
        out_shape=jax.ShapeDtypeStruct((B, D_out_pad), jnp.float32),
        grid=grid,
        in_specs=[
            pl.BlockSpec((tile_b, D_in), lambda i: (i, 0)),   # x: pipelined over batch
            _resident_spec((D_in, D_out_pad)),                # W^T: resident, 1 buffer
            _resident_spec((1, D_out_pad)),                   # bias: resident, 1 buffer
        ],
        out_specs=pl.BlockSpec((tile_b, D_out_pad), lambda i: (i, 0)),
        compiler_params=pltpu.CompilerParams(
            dimension_semantics=("parallel",),
            vmem_limit_bytes=_VMEM_LIMIT_BYTES,
        ),
        cost_estimate=cost,
    )(x, w_t_pad, b_pad)


# --------------------- distribution wrapper (plain JAX) ---------------------

class FixedCategoricalJax:
    """Mirrors FixedCategorical on top of lane-padded normalized logits.

    `logits_padded` has shape (B, D_out_pad), D_out_pad a multiple of 128; lanes
    >= num_outputs hold ~-1e30 (probability 0).  mode/sample/log_probs operate on
    the padded array directly (no slicing pass); any consumer that reduces over
    the class axis must use these methods or slice to `num_outputs` first.
    """

    def __init__(self, logits_padded, num_outputs):
        self.logits_padded = logits_padded
        self.num_outputs = num_outputs

    @property
    def logits(self):
        # Lazy slice -- only materialized if the caller asks for the exact-width view.
        return self.logits_padded[:, :self.num_outputs]

    @property
    def probs(self):
        return jnp.exp(self.logits)          # cheap; recomputed instead of stored

    def mode(self):
        # Padded lanes (~-1e30) can never be the argmax.
        return jnp.argmax(self.logits_padded, axis=-1, keepdims=True)

    def log_probs(self, actions):
        # actions: [B, 1] int, indexing real classes only.
        a = actions.reshape(actions.shape[0], -1)[:, :1]
        lp = jnp.take_along_axis(self.logits_padded, a, axis=-1)        # [B, 1]
        return lp.reshape(actions.shape[0], -1).sum(-1, keepdims=True)

    def sample(self, key):
        # Padded lanes underflow to probability 0 under Gumbel-max sampling.
        return jax.random.categorical(key, self.logits_padded, axis=-1)[..., None]


# ------------------------- parameter initialization -------------------------

def orthogonal_init(key, out_features, in_features, gain):
    """Deterministic orthogonal init (same spirit as nn.init.orthogonal_)."""
    rows, cols = out_features, in_features
    a = jax.random.normal(key, (max(rows, cols), min(rows, cols)), jnp.float32)
    q, r = jnp.linalg.qr(a)
    q = q * jnp.sign(jnp.diagonal(r))        # make distribution uniform
    if rows < cols:
        q = q.T
    return gain * q[:rows, :cols]


class CategoricalPallas:
    """Pallas-backed equivalent of the PyTorch `Categorical` module."""

    def __init__(self, num_inputs, num_outputs, key, compute_dtype=jnp.float32):
        self.num_outputs = num_outputs
        w = orthogonal_init(key, num_outputs, num_inputs, gain=0.01)   # [out, in] f32
        self.w_t = jnp.asarray(w.T, jnp.float32)                       # [in, out] (reference)
        self.b = jnp.zeros((num_outputs,), jnp.float32)

        # Lane-pad the class dimension to a multiple of 128 once, at init.
        d_out_pad = _round_up(num_outputs, 128)
        w_t_pad = jnp.zeros((num_inputs, d_out_pad), jnp.float32)
        w_t_pad = w_t_pad.at[:, :num_outputs].set(self.w_t)
        # compute_dtype=bf16: native MXU rate on v6e/v7x, halved weight residency/DMA;
        # accumulation and the log-softmax epilogue remain f32 inside the kernel.
        self.w_t_pad = w_t_pad.astype(compute_dtype)
        b_pad = jnp.full((1, d_out_pad), _NEG_INF, jnp.float32)
        self.b_pad = b_pad.at[:, :num_outputs].set(self.b)

    def __call__(self, x):
        logits_padded = categorical_forward(x, self.w_t_pad, self.b_pad)
        return FixedCategoricalJax(logits_padded, self.num_outputs)


# ----------------------------------- main -----------------------------------

if __name__ == "__main__":
    key = jax.random.PRNGKey(0)
    k_x, k_w, k_s = jax.random.split(key, 3)

    batch = 8
    num_inputs = 32
    num_outputs = 16

    x = jax.random.normal(k_x, (batch, num_inputs), jnp.float32)

    # Pure-JAX reference (matches the torch f32 module semantics).
    module = CategoricalPallas(num_inputs, num_outputs, k_w)            # f32 path
    z_ref = x @ module.w_t + module.b
    logits_ref = z_ref - jax.scipy.special.logsumexp(z_ref, axis=-1, keepdims=True)
    probs_ref = jax.nn.softmax(z_ref, axis=-1)

    # --- f32 path: exact-semantics check -------------------------------------
    dist = module(x)
    logits = jax.block_until_ready(dist.logits)
    probs = jax.block_until_ready(dist.probs)
    assert logits.shape == (batch, num_outputs)
    assert jnp.allclose(logits, logits_ref, atol=1e-5)
    assert jnp.allclose(probs, probs_ref, atol=1e-5)
    assert jnp.allclose(probs.sum(-1), 1.0, atol=1e-5)

    mode = jax.block_until_ready(dist.mode())
    assert jnp.array_equal(mode[:, 0], jnp.argmax(logits_ref, axis=-1))
    lp = jax.block_until_ready(dist.log_probs(mode))
    lp_ref = jnp.take_along_axis(logits_ref, mode, axis=-1)
    assert jnp.allclose(lp, lp_ref, atol=1e-5)
    samples = jax.block_until_ready(dist.sample(k_s))
    assert samples.shape == (batch, 1)
    assert bool(jnp.all((samples >= 0) & (samples < num_outputs)))

    # --- bf16-MXU path (v6e/v7x perf option; f32 accumulation + epilogue) ----
    module_bf16 = CategoricalPallas(num_inputs, num_outputs, k_w,
                                    compute_dtype=jnp.bfloat16)
    dist_bf16 = module_bf16(x)
    logits_bf16 = jax.block_until_ready(dist_bf16.logits)
    assert jnp.allclose(logits_bf16, logits_ref, atol=2e-2)
    _ = jax.block_until_ready(dist_bf16.mode())
    _ = jax.block_until_ready(dist_bf16.sample(k_s))

    print("KERNEL_OK")
</pallas_src>

<mosaic_0001>
module attributes {stable_mosaic.version = 11 : i64} {
  func.func @_categorical_logits_kernel(%arg0: i32, %arg1: memref<8x32xf32, #tpu.memory_space<vmem>>, %arg2: memref<32x128xf32, #tpu.memory_space<vmem>>, %arg3: memref<1x128xf32, #tpu.memory_space<vmem>>, %arg4: memref<8x128xf32, #tpu.memory_space<vmem>>) attributes {dimension_semantics = [#tpu.dimension_semantics<parallel>], iteration_bounds = array<i64: 1>, scalar_prefetch = 0 : i64, scratch_operands = 0 : i64, tpu.core_type = #tpu.core_type<tc>, window_params = [{transform_indices = @transform_0, window_bounds = array<i64: 8, 32>}, {pipeline_mode = #tpu.pipeline_mode<synchronous>, transform_indices = @transform_1, window_bounds = array<i64: 32, 128>}, {pipeline_mode = #tpu.pipeline_mode<synchronous>, transform_indices = @transform_2, window_bounds = array<i64: 1, 128>}, {transform_indices = @transform_3, window_bounds = array<i64: 8, 128>}]} {
    %c0 = arith.constant 0 : index
    %c0_0 = arith.constant 0 : index
    %0 = vector.load %arg1[%c0, %c0_0] : memref<8x32xf32, #tpu.memory_space<vmem>>, vector<8x32xf32>
    %c0_1 = arith.constant 0 : index
    %c0_2 = arith.constant 0 : index
    %1 = vector.load %arg2[%c0_1, %c0_2] : memref<32x128xf32, #tpu.memory_space<vmem>>, vector<32x128xf32>
    %cst = arith.constant dense<0.000000e+00> : vector<8x128xf32>
    %2 = tpu.matmul %0, %1, %cst {dimension_numbers = #tpu.dot_dimension_numbers<[1], [0], [0], [1], [0, 0, 1, 1], [], []>} : vector<8x32xf32>, vector<32x128xf32>, vector<8x128xf32> -> vector<8x128xf32>
    %c0_3 = arith.constant 0 : index
    %c0_4 = arith.constant 0 : index
    %3 = vector.load %arg3[%c0_3, %c0_4] : memref<1x128xf32, #tpu.memory_space<vmem>>, vector<1x128xf32>
    %4 = vector.broadcast %3 : vector<1x128xf32> to vector<8x128xf32>
    %5 = arith.addf %2, %4 : vector<8x128xf32>
    %cst_5 = arith.constant dense<0xFF800000> : vector<8xf32>
    %6 = vector.multi_reduction <maximumf>, %5, %cst_5 [1] : vector<8x128xf32> to vector<8xf32>
    %7 = vector.shape_cast %6 : vector<8xf32> to vector<8x1xf32>
    %8 = vector.broadcast %7 : vector<8x1xf32> to vector<8x128xf32>
    %9 = arith.subf %5, %8 : vector<8x128xf32>
    %10 = math.exp %9 : vector<8x128xf32>
    %cst_6 = arith.constant dense<0.000000e+00> : vector<8xf32>
    %11 = vector.multi_reduction <add>, %10, %cst_6 [1] : vector<8x128xf32> to vector<8xf32>
    %12 = vector.shape_cast %11 : vector<8xf32> to vector<8x1xf32>
    %13 = math.log %12 : vector<8x1xf32>
    %14 = arith.addf %7, %13 : vector<8x1xf32>
    %15 = vector.broadcast %14 : vector<8x1xf32> to vector<8x128xf32>
    %16 = arith.subf %5, %15 : vector<8x128xf32>
    %c0_7 = arith.constant 0 : index
    %c0_8 = arith.constant 0 : index
    %17 = vector.load %arg4[%c0_7, %c0_8] : memref<8x128xf32, #tpu.memory_space<vmem>>, vector<8x128xf32>
    tpu.vector_store %arg4[%c0_7, %c0_8], %16 {strides = array<i32>} : memref<8x128xf32, #tpu.memory_space<vmem>>, vector<8x128xf32>,
    return
  }
  func.func @transform_0(%arg0: i32) -> (i32, i32) {
    %c0_i32 = arith.constant 0 : i32
    %c0_i32_0 = arith.constant 0 : i32
    return %arg0, %c0_i32 : i32, i32
  }
  func.func @transform_1(%arg0: i32) -> (i32, i32) {
    %c0_i32 = arith.constant 0 : i32
    %c0_i32_0 = arith.constant 0 : i32
    %c0_i32_1 = arith.constant 0 : i32
    return %c0_i32, %c0_i32_0 : i32, i32
  }
  func.func @transform_2(%arg0: i32) -> (i32, i32) {
    %c0_i32 = arith.constant 0 : i32
    %c0_i32_0 = arith.constant 0 : i32
    %c0_i32_1 = arith.constant 0 : i32
    return %c0_i32, %c0_i32_0 : i32, i32
  }
  func.func @transform_3(%arg0: i32) -> (i32, i32) {
    %c0_i32 = arith.constant 0 : i32
    %c0_i32_0 = arith.constant 0 : i32
    return %arg0, %c0_i32 : i32, i32
  }
}

</mosaic_0001>

<llo_original>
// kernel: categorical_forward.1
$region0: #{categorical_forward.1}
  #allocation0 [shape = 'u32[]', space=smem, size = 0x4, offset = 0x4, fixed_abs, tag = 'smem constant byte address 0x4 - core index']
  #allocation1 [shape = 'u32[72,128]{1,0:T(1,128)}', space=vmem, size = 0x9000, scoped, tag = 'internal scratch']
  %s0 = inlined_call_operand.hbm [shape: f32[8,32], index: 0, kind: input, shape index: {}]
  %s1 = inlined_call_operand.hbm [shape: f32[32,128], index: 1, kind: input, shape index: {}]
  %s2 = inlined_call_operand.vmem [shape: f32[1,128], index: 2, kind: input, shape index: {}]
  %s3 = inlined_call_operand.hbm [shape: f32[8,128], index: 3, kind: output, shape index: {}]
  %s4 = sld [smem:[#allocation0]]
  $region30: #{categorical_forward.1} parent=0
    _
  %s6 = ssub.s32 1, %s4
  %s7 = scalar_select 0, %s6, %s4
  $region1: #{categorical_forward.1} parent=0
    #allocation2 [shape = 'u8[4096]{0}', space=vmem, size = 0x1000, scoped, tag = 'input window, operand 0, single buffered']
    #allocation3 [shape = 's32[1]{0}', space=sflag, size = 0x4, scoped, tag = 'scoped memory for categorical_forward.1']
    #allocation4 [shape = 's32[1]{0}', space=sflag, size = 0x4, scoped, tag = 'scoped memory for categorical_forward.1']
    #allocation5 [shape = 'u8[16384]{0}', space=vmem, size = 0x4000, scoped, tag = 'input window, operand 1, single buffered']
    #allocation6 [shape = 's32[1]{0}', space=sflag, size = 0x4, scoped, tag = 'scoped memory for categorical_forward.1']
    #allocation7 [shape = 'u8[4096]{0}', space=vmem, size = 0x1000, scoped, tag = 'output window, operand 0, single buffered']
    %8 = vsyncpa [#allocation3], 0
    %9 = vsyncpa [#allocation6], 0
    %10 = vsyncpa [#allocation4], 0
    // Predicated region
    $region2: #{categorical_forward.1} parent=1 // pred_check
      _
    $region3: #{categorical_forward.1} parent=1 // pred_check_branch
      %12 = sbr.rel (0) target = $region5
    $region4: #{categorical_forward.1} parent=1 // pred_region
      %14 = vsyncadd [#allocation3], 0
      %s16 = sshll.u32 %s0, 4
      %s17 = int_to_ptr.hbm [resolvable:$true] %s16
      %s18 = sshll.u32 [#allocation2], 4
      %s19 = int_to_ptr.vmem [resolvable:$true] %s18
      %21 = dma.hbm_to_vmem [thread:$0]  %s17, 128, %s19, [#allocation3]
    $region5: #{categorical_forward.1} parent=1 // pred_fallthru
      _
    // Predicated region
    $region6: #{categorical_forward.1} parent=1 // pred_check
      _
    $region7: #{categorical_forward.1} parent=1 // pred_check_branch
      %23 = sbr.rel (0) target = $region9
    $region8: #{categorical_forward.1} parent=1 // pred_region
      %25 = vsyncadd [#allocation6], 0
      %s26 = sshll.u32 %s1, 4
      %s27 = int_to_ptr.hbm [resolvable:$true] %s26
      %s28 = sshll.u32 [#allocation5], 4
      %s29 = int_to_ptr.vmem [resolvable:$true] %s28
      %34 = dma.hbm_to_vmem [thread:$0]  %s27, 512, %s29, [#allocation6], 128, 128, 8
    $region9: #{categorical_forward.1} parent=1 // pred_fallthru
      _
    // Predicated region
    $region10: #{categorical_forward.1} parent=1 // pred_check
      _
    $region11: #{categorical_forward.1} parent=1 // pred_check_branch
      %36 = sbr.rel (0) target = $region13
    $region12: #{categorical_forward.1} parent=1 // pred_region
      _
    $region13: #{categorical_forward.1} parent=1 // pred_fallthru
      _
    // Predicated region
    $region14: #{categorical_forward.1} parent=1 // pred_check
      _
    $region15: #{categorical_forward.1} parent=1 // pred_check_branch
      %38 = sbr.rel (0) target = $region17
    $region16: #{categorical_forward.1} parent=1 // pred_region
      %40 = dma.done [#allocation3], 128
    $region17: #{categorical_forward.1} parent=1 // pred_fallthru
      _
    // Predicated region
    $region18: #{categorical_forward.1} parent=1 // pred_check
      _
    $region19: #{categorical_forward.1} parent=1 // pred_check_branch
      %42 = sbr.rel (0) target = $region21
    $region20: #{categorical_forward.1} parent=1 // pred_region
      %44 = dma.done [#allocation6], 512
    $region21: #{categorical_forward.1} parent=1 // pred_fallthru
      _
    %v45 = vld [vmem:[#allocation2] sm:$0xff]
    %v46 = vld [vmem:[#allocation5] sm:$0xff]
    %v47 = vld [vmem:[#allocation5 + $0x8] sm:$0xff]
    %v48 = vld [vmem:[#allocation5 + $0x10] sm:$0xff]
    %v49 = vld [vmem:[#allocation5 + $0x18] sm:$0xff]
    %v50 = vld [vmem:[%s2] sm:$0x1]
    %v52 = vperm.slane %v50, 0
    %vm54 = vcmask 261120
    %v56 = vsel %vm54, %v45, 0
    %58 = vmatpush.msra.mxu0 0.0
    %59 = vmatpush.msra.mxu0 0.0
    %60 = vmatpush.msra.mxu0 0.0
    %61 = vmatpush.msra.mxu0 0.0
    %62 = vmatpush.msra.mxu0 0.0
    %63 = vmatpush.msra.mxu0 0.0
    %64 = vmatpush.msra.mxu0 0.0
    %65 = vmatpush.msra.mxu0 0.0
    %66 = vmatpush.msra.mxu0 0.0
    %67 = vmatpush.msra.mxu0 0.0
    %68 = vmatpush.msra.mxu0 0.0
    %69 = vmatpush.msra.mxu0 0.0
    %70 = vmatpush.msra.mxu0 %v49
    %71 = vmatpush.msra.mxu0 %v48
    %72 = vmatpush.msra.mxu0 %v47
    %73 = vmatpush.msra.mxu0 %v46
    %74 = vmatmul.f32.gmra.mxu0 %v56
    %v75 = vpop.f32.mrf.mxu0
    %v76 = vadd.f32 %v52, %v75
    %77 = vdwg.mxu0
    %78 = vmax.xlane.f32.xlu0 %v76
    %v79 = vpop.xlane.xlu0 %78
    %v80 = vsub.f32 %v76, %v79
    %v81 = vmul.f32 %v80, 1.442695
    %v82 = vpow.pop %v81
    %83 = vadd.xlane.f32.xlu0 %v82
    %v84 = vpop.xlane.xlu0 %83
    %v85 = vlog2.pop %v84
    %v86 = vmul.f32 %v85, 0.6931472
    %v87 = vadd.f32 %v79, %v86
    %v88 = vsub.f32 %v76, %v87
    %89 = vst [vmem:[#allocation7] sm:$0xff] %v88
    // Predicated region
    $region22: #{categorical_forward.1} parent=1 // pred_check
      _
    $region23: #{categorical_forward.1} parent=1 // pred_check_branch
      %91 = sbr.rel (0) target = $region25
    $region24: #{categorical_forward.1} parent=1 // pred_region
      %93 = vsyncadd [#allocation4], 0
      %s95 = sshll.u32 [#allocation7], 4
      %s96 = int_to_ptr.vmem [resolvable:$true] %s95
      %s97 = sshll.u32 %s3, 4
      %s98 = int_to_ptr.hbm [resolvable:$true] %s97
      %100 = dma.vmem_to_hbm [thread:$0]  %s96, 128, %s98, [#allocation4]
    $region25: #{categorical_forward.1} parent=1 // pred_fallthru
      _
    // Predicated region
    $region26: #{categorical_forward.1} parent=1 // pred_check
      _
    $region27: #{categorical_forward.1} parent=1 // pred_check_branch
      %102 = sbr.rel (0) target = $region29
    $region28: #{categorical_forward.1} parent=1 // pred_region
      %104 = dma.done [#allocation4], 128
    $region29: #{categorical_forward.1} parent=1 // pred_fallthru
      _
    %105 = vsyncpa [#allocation3], 1
    %106 = vsyncpa [#allocation6], 1
    %107 = vsyncpa [#allocation4], 1

</llo_original>
